<compile_context>
chip_gen: v5e
topology: v5e:2x2
jax: 0.10.0
libtpu: 0.0.40
codegen_flags: <defaults>
</compile_context>

<pallas_src>
import jax
import jax.numpy as jnp
from jax import lax
from jax.experimental import pallas as pl
from jax.experimental.pallas import tpu as pltpu


def _pick_block_rows(H, W, target_m=128):
    """Pick the row-strip height TH.

    Constraints: TH divides H, and TH is a multiple of 8 (sublane-aligned output
    strip) unless TH == H.  Aim for a matmul M dimension TH*W around `target_m`
    (128 suits v5e's 128-wide MXU tiles; 256 suits v6e/v7x).
    """
    candidates = [th for th in range(1, H + 1)
                  if H % th == 0 and (th % 8 == 0 or th == H)]
    best = candidates[0]
    for th in candidates:
        if th * W <= max(target_m, W):
            best = th
    return best


def _make_upsample_kernel(W, C, Co, S, TH):
    L = S * W * Co          # lane-dense length of one duplicated output row

    def kernel(x_ref, w_ref, b_ref, o_ref):
        # x_ref: (1, H+2, W+2, C)   whole padded image (resident across strips)
        # w_ref: (9*C, Co)          conv weights, (kh, kw, cin) flattened into K
        # b_ref: (1, Co)            conv bias
        # o_ref: (1, TH, S*S*W*Co)  output strip, upsample duplication in lanes
        r0 = pl.multiple_of(pl.program_id(1) * TH, TH)

        # ---- im2col: one (TH*W, 9*C) patch matrix (kh-major, kw, c order) ----
        cols = []
        for kh in range(3):
            rows = x_ref[0, pl.ds(r0 + kh, TH), :, :]          # (TH, W+2, C)
            for kw in range(3):
                cols.append(rows[:, kw:kw + W, :].reshape(TH * W, C))
        patches = jnp.concatenate(cols, axis=-1)               # (TH*W, 9*C)

        # ---- single fused MXU matmul + bias (f32 accumulation) ----
        acc = jnp.dot(patches, w_ref[...],
                      preferred_element_type=jnp.float32)      # (TH*W, Co)
        acc = acc + b_ref[...].astype(jnp.float32)
        y = acc.astype(o_ref.dtype).reshape(TH, W, Co)

        # ---- nearest-neighbour upsample, packed lane-dense ----
        # duplicate along W: lane order becomes (w, s_w, c)
        y = jnp.concatenate([y] * S, axis=-1)                  # (TH, W, S*Co)
        y = y.reshape(TH, L)                                   # (TH, S*W*Co)
        # duplicate along H: lane order becomes (s_h, w, s_w, c)
        y = jnp.concatenate([y] * S, axis=-1)                  # (TH, S*S*W*Co)
        o_ref[0] = y                                           # one dense store

    return kernel


def upsample_forward(x_nchw, weight_oihw, bias, scale_factor=2,
                     block_rows=None, compute_dtype=None):
    """Conv2d(3x3, pad=1) + nearest upsample by `scale_factor`.  x is NCHW.

    compute_dtype: optionally cast activations/weights (e.g. jnp.bfloat16) for
    the MXU matmul; accumulation stays f32.  Left at None here so the f32
    reference check stays tight.
    """
    N, C, H, W = x_nchw.shape
    Co = weight_oihw.shape[0]
    S = int(scale_factor)
    TH = block_rows if block_rows is not None else _pick_block_rows(H, W)
    assert H % TH == 0

    # ---- glue: layout conversion / padding / weight reshape (plain JAX) ----
    x_nhwc = jnp.transpose(x_nchw, (0, 2, 3, 1))                      # NHWC
    x_pad = jnp.pad(x_nhwc, ((0, 0), (1, 1), (1, 1), (0, 0)))         # SAME pad
    # OIHW -> (kh, kw, Cin, Cout) -> (9*Cin, Cout): fused im2col matmul operand
    w2 = jnp.transpose(weight_oihw, (2, 3, 1, 0)).reshape(9 * C, Co)
    b2 = bias.reshape(1, Co)
    if compute_dtype is not None:
        x_pad = x_pad.astype(compute_dtype)
        w2 = w2.astype(compute_dtype)

    L = S * W * Co            # duplicated row length (lane-dense)
    L2 = S * L                # with the H-duplication folded into lanes too

    out = pl.pallas_call(
        _make_upsample_kernel(W, C, Co, S, TH),
        out_shape=jax.ShapeDtypeStruct((N, H, L2), x_nchw.dtype),
        grid=(N, H // TH),
        in_specs=[
            # whole padded image; same block for every strip -> stays resident
            pl.BlockSpec((1, H + 2, W + 2, C), lambda n, t: (n, 0, 0, 0)),
            pl.BlockSpec((9 * C, Co), lambda n, t: (0, 0)),
            pl.BlockSpec((1, Co), lambda n, t: (0, 0)),
        ],
        out_specs=pl.BlockSpec((1, TH, L2), lambda n, t: (n, t, 0)),
        compiler_params=pltpu.CompilerParams(
            dimension_semantics=("parallel", "parallel"),
            vmem_limit_bytes=64 * 1024 * 1024),
    )(x_pad, w2, b2)

    # (N, H, S*(S*W*Co)) -> (N, S*H, S*W, Co) is a pure (free) reshape: the kernel
    # already wrote the final interleaved order.  Only the NHWC->NCHW transpose
    # remains (unavoidable given the PyTorch NCHW interface).
    up = out.reshape(N, S * H, S * W, Co)
    return jnp.transpose(up, (0, 3, 1, 2))


def _reference(x_nchw, weight_oihw, bias, scale_factor=2):
    y = lax.conv_general_dilated(
        x_nchw, weight_oihw, window_strides=(1, 1),
        padding=((1, 1), (1, 1)),
        dimension_numbers=("NCHW", "OIHW", "NCHW"),
        precision=lax.Precision.HIGHEST)
    y = y + bias[None, :, None, None]
    y = jnp.repeat(jnp.repeat(y, scale_factor, axis=2), scale_factor, axis=3)
    return y


if __name__ == "__main__":
    key = jax.random.PRNGKey(0)
    k_x, k_w, k_b = jax.random.split(key, 3)

    N, C_in, H, W = 2, 4, 16, 16
    C_out = C_in            # module default: out_channels=None -> in_channels
    scale = 2               # module default scale_factor

    x = jax.random.normal(k_x, (N, C_in, H, W), dtype=jnp.float32)
    # deterministic synthetic parameters (Conv2d weight: (Cout, Cin, 3, 3))
    weight = 0.1 * jax.random.normal(k_w, (C_out, C_in, 3, 3), dtype=jnp.float32)
    bias = 0.1 * jax.random.normal(k_b, (C_out,), dtype=jnp.float32)

    out = upsample_forward(x, weight, bias, scale)
    out = jax.block_until_ready(out)

    assert out.shape == (N, C_out, scale * H, scale * W), out.shape

    ref = _reference(x, weight, bias, scale)
    if not jnp.allclose(out, ref, atol=1e-3, rtol=1e-3):
        raise AssertionError("Pallas Upsample kernel mismatch vs reference")

    print("KERNEL_OK")
</pallas_src>

<mosaic_0001>
module attributes {stable_mosaic.version = 11 : i64} {
  func.func @kernel(%arg0: i32, %arg1: i32, %arg2: memref<1x18x18x4xf32, #tpu.memory_space<vmem>>, %arg3: memref<36x4xf32, #tpu.memory_space<vmem>>, %arg4: memref<1x4xf32, #tpu.memory_space<vmem>>, %arg5: memref<1x8x256xf32, #tpu.memory_space<vmem>>) attributes {dimension_semantics = [#tpu.dimension_semantics<parallel>, #tpu.dimension_semantics<parallel>], iteration_bounds = array<i64: 2, 2>, scalar_prefetch = 0 : i64, scratch_operands = 0 : i64, tpu.core_type = #tpu.core_type<tc>, window_params = [{transform_indices = @transform_0, window_bounds = array<i64: 1, 18, 18, 4>}, {pipeline_mode = #tpu.pipeline_mode<synchronous>, transform_indices = @transform_1, window_bounds = array<i64: 36, 4>}, {pipeline_mode = #tpu.pipeline_mode<synchronous>, transform_indices = @transform_2, window_bounds = array<i64: 1, 4>}, {transform_indices = @transform_3, window_bounds = array<i64: 1, 8, 256>}]} {
    %c8_i32 = arith.constant 8 : i32
    %0 = arith.muli %arg1, %c8_i32 : i32
    %1 = tpu.assume_multiple %0, 8 : i32
    %c0_i32 = arith.constant 0 : i32
    %2 = arith.addi %1, %c0_i32 : i32
    %c0 = arith.constant 0 : index
    %3 = arith.index_cast %2 : i32 to index
    %c0_0 = arith.constant 0 : index
    %c0_1 = arith.constant 0 : index
    %4 = vector.load %arg2[%c0, %3, %c0_0, %c0_1] : memref<1x18x18x4xf32, #tpu.memory_space<vmem>>, vector<1x8x18x4xf32>
    %5 = vector.shape_cast %4 : vector<1x8x18x4xf32> to vector<8x18x4xf32>
    %6 = vector.extract_strided_slice %5 {offsets = [0, 0, 0], sizes = [8, 16, 4], strides = [1, 1, 1]} : vector<8x18x4xf32> to vector<8x16x4xf32>
    %7 = vector.shape_cast %6 : vector<8x16x4xf32> to vector<128x4xf32>
    %8 = vector.extract_strided_slice %5 {offsets = [0, 1, 0], sizes = [8, 16, 4], strides = [1, 1, 1]} : vector<8x18x4xf32> to vector<8x16x4xf32>
    %9 = vector.shape_cast %8 : vector<8x16x4xf32> to vector<128x4xf32>
    %10 = vector.extract_strided_slice %5 {offsets = [0, 2, 0], sizes = [8, 16, 4], strides = [1, 1, 1]} : vector<8x18x4xf32> to vector<8x16x4xf32>
    %11 = vector.shape_cast %10 : vector<8x16x4xf32> to vector<128x4xf32>
    %c1_i32 = arith.constant 1 : i32
    %12 = arith.addi %1, %c1_i32 : i32
    %c0_2 = arith.constant 0 : index
    %13 = arith.index_cast %12 : i32 to index
    %c0_3 = arith.constant 0 : index
    %c0_4 = arith.constant 0 : index
    %14 = vector.load %arg2[%c0_2, %13, %c0_3, %c0_4] : memref<1x18x18x4xf32, #tpu.memory_space<vmem>>, vector<1x8x18x4xf32>
    %15 = vector.shape_cast %14 : vector<1x8x18x4xf32> to vector<8x18x4xf32>
    %16 = vector.extract_strided_slice %15 {offsets = [0, 0, 0], sizes = [8, 16, 4], strides = [1, 1, 1]} : vector<8x18x4xf32> to vector<8x16x4xf32>
    %17 = vector.shape_cast %16 : vector<8x16x4xf32> to vector<128x4xf32>
    %18 = vector.extract_strided_slice %15 {offsets = [0, 1, 0], sizes = [8, 16, 4], strides = [1, 1, 1]} : vector<8x18x4xf32> to vector<8x16x4xf32>
    %19 = vector.shape_cast %18 : vector<8x16x4xf32> to vector<128x4xf32>
    %20 = vector.extract_strided_slice %15 {offsets = [0, 2, 0], sizes = [8, 16, 4], strides = [1, 1, 1]} : vector<8x18x4xf32> to vector<8x16x4xf32>
    %21 = vector.shape_cast %20 : vector<8x16x4xf32> to vector<128x4xf32>
    %c2_i32 = arith.constant 2 : i32
    %22 = arith.addi %1, %c2_i32 : i32
    %c0_5 = arith.constant 0 : index
    %23 = arith.index_cast %22 : i32 to index
    %c0_6 = arith.constant 0 : index
    %c0_7 = arith.constant 0 : index
    %24 = vector.load %arg2[%c0_5, %23, %c0_6, %c0_7] : memref<1x18x18x4xf32, #tpu.memory_space<vmem>>, vector<1x8x18x4xf32>
    %25 = vector.shape_cast %24 : vector<1x8x18x4xf32> to vector<8x18x4xf32>
    %26 = vector.extract_strided_slice %25 {offsets = [0, 0, 0], sizes = [8, 16, 4], strides = [1, 1, 1]} : vector<8x18x4xf32> to vector<8x16x4xf32>
    %27 = vector.shape_cast %26 : vector<8x16x4xf32> to vector<128x4xf32>
    %28 = vector.extract_strided_slice %25 {offsets = [0, 1, 0], sizes = [8, 16, 4], strides = [1, 1, 1]} : vector<8x18x4xf32> to vector<8x16x4xf32>
    %29 = vector.shape_cast %28 : vector<8x16x4xf32> to vector<128x4xf32>
    %30 = vector.extract_strided_slice %25 {offsets = [0, 2, 0], sizes = [8, 16, 4], strides = [1, 1, 1]} : vector<8x18x4xf32> to vector<8x16x4xf32>
    %31 = vector.shape_cast %30 : vector<8x16x4xf32> to vector<128x4xf32>
    %32 = tpu.concatenate %7, %9, %11, %17, %19, %21, %27, %29, %31 in 1 : vector<128x4xf32>, vector<128x4xf32>, vector<128x4xf32>, vector<128x4xf32>, vector<128x4xf32>, vector<128x4xf32>, vector<128x4xf32>, vector<128x4xf32>, vector<128x4xf32> -> vector<128x36xf32>
    %c0_8 = arith.constant 0 : index
    %c0_9 = arith.constant 0 : index
    %33 = vector.load %arg3[%c0_8, %c0_9] : memref<36x4xf32, #tpu.memory_space<vmem>>, vector<36x4xf32>
    %cst = arith.constant dense<0.000000e+00> : vector<128x4xf32>
    %34 = tpu.matmul %32, %33, %cst {dimension_numbers = #tpu.dot_dimension_numbers<[1], [0], [0], [1], [0, 0, 1, 1], [], []>} : vector<128x36xf32>, vector<36x4xf32>, vector<128x4xf32> -> vector<128x4xf32>
    %c0_10 = arith.constant 0 : index
    %c0_11 = arith.constant 0 : index
    %35 = vector.load %arg4[%c0_10, %c0_11] : memref<1x4xf32, #tpu.memory_space<vmem>>, vector<1x4xf32>
    %36 = vector.broadcast %35 : vector<1x4xf32> to vector<128x4xf32>
    %37 = arith.addf %34, %36 : vector<128x4xf32>
    %38 = vector.shape_cast %37 : vector<128x4xf32> to vector<8x16x4xf32>
    %39 = tpu.concatenate %38, %38 in 2 : vector<8x16x4xf32>, vector<8x16x4xf32> -> vector<8x16x8xf32>
    %40 = vector.shape_cast %39 : vector<8x16x8xf32> to vector<8x128xf32>
    %41 = tpu.concatenate %40, %40 in 1 : vector<8x128xf32>, vector<8x128xf32> -> vector<8x256xf32>
    %c0_12 = arith.constant 0 : index
    %c0_13 = arith.constant 0 : index
    %c0_14 = arith.constant 0 : index
    %42 = vector.load %arg5[%c0_12, %c0_13, %c0_14] : memref<1x8x256xf32, #tpu.memory_space<vmem>>, vector<1x8x256xf32>
    %43 = vector.shape_cast %42 : vector<1x8x256xf32> to vector<8x256xf32>
    %44 = vector.shape_cast %41 : vector<8x256xf32> to vector<1x8x256xf32>
    tpu.vector_store %arg5[%c0_12, %c0_13, %c0_14], %44 {strides = array<i32>} : memref<1x8x256xf32, #tpu.memory_space<vmem>>, vector<1x8x256xf32>,
    return
  }
  func.func @transform_0(%arg0: i32, %arg1: i32) -> (i32, i32, i32, i32) {
    %c0_i32 = arith.constant 0 : i32
    %c0_i32_0 = arith.constant 0 : i32
    %c0_i32_1 = arith.constant 0 : i32
    %c0_i32_2 = arith.constant 0 : i32
    return %arg0, %c0_i32, %c0_i32_0, %c0_i32_1 : i32, i32, i32, i32
  }
  func.func @transform_1(%arg0: i32, %arg1: i32) -> (i32, i32) {
    %c0_i32 = arith.constant 0 : i32
    %c0_i32_0 = arith.constant 0 : i32
    %c0_i32_1 = arith.constant 0 : i32
    return %c0_i32, %c0_i32_0 : i32, i32
  }
  func.func @transform_2(%arg0: i32, %arg1: i32) -> (i32, i32) {
    %c0_i32 = arith.constant 0 : i32
    %c0_i32_0 = arith.constant 0 : i32
    %c0_i32_1 = arith.constant 0 : i32
    return %c0_i32, %c0_i32_0 : i32, i32
  }
  func.func @transform_3(%arg0: i32, %arg1: i32) -> (i32, i32, i32) {
    %c0_i32 = arith.constant 0 : i32
    %c0_i32_0 = arith.constant 0 : i32
    return %arg0, %arg1, %c0_i32 : i32, i32, i32
  }
}

</mosaic_0001>

<llo_original>
// kernel: tpu_custom_call.1
$region0: #{tpu_custom_call.1}
  #allocation0 [shape = 'u32[]', space=smem, size = 0x4, offset = 0x4, fixed_abs, tag = 'smem constant byte address 0x4 - core index']
  #allocation1 [shape = 'u32[72,128]{1,0:T(1,128)}', space=vmem, size = 0x9000, scoped, tag = 'internal scratch']
  %s0 = inlined_call_operand.vmem [shape: f32[2,18,18,4], index: 0, kind: input, shape index: {}]
  %s1 = inlined_call_operand.vmem [shape: f32[36,4], index: 1, kind: input, shape index: {}]
  %s2 = inlined_call_operand.vmem [shape: f32[1,4], index: 2, kind: input, shape index: {}]
  %s3 = inlined_call_operand.hbm [shape: f32[2,16,256], index: 3, kind: output, shape index: {}]
  %s4 = sld [smem:[#allocation0]]
  $region45: #{tpu_custom_call.1} parent=0
    _
  %s6 = ssub.s32 1, %s4
  %s7 = scalar_select 0, %s6, %s4
  $region1: #{tpu_custom_call.1} parent=0
    #allocation2 [shape = 'u8[16384]{0}', space=vmem, size = 0x4000, scoped, tag = 'output window, operand 0']
    #allocation3 [shape = 's32[2]{0}', space=sflag, size = 0x8, scoped, tag = 'scoped memory for tpu_custom_call.1']
    %8 = vsyncpa [#allocation3], 0
    %s9 = scalar_lea.sflag [#allocation3], 1
    %10 = vsyncpa %s9, 0
    loop: start=0, step=1, limit=6
    $region2: #{tpu_custom_call.1} parent=1 // loop_pre_header
      _
    $region3: #{tpu_custom_call.1} parent=1 // loop_header
      %s12 = sphi 0, %s16
      %p13 = scmp.ge.s32.totalorder %s12, 6
      %s19 = sphi 0, %s31
      %s20 = sphi 0, %s27
      %s21 = sphi 0, %s19
      %s22 = sphi 0, %s20
      %s23 = sphi 0, %s21
      %s24 = sphi 0, %s22
      %s34 = sphi 0, %s36
      %s37 = sphi 0, %s34
      %s38 = sphi 0, %s37
      %s54 = sphi 0, %s38
      %s58 = sphi 0, %s58
      %s60 = sphi 0, %s58
      %s61 = sphi 0, %s60
      %s75 = sphi 0, %s61
      %s79 = sphi 0, %s79
      %s81 = sphi 0, %s79
      %s82 = sphi 0, %s81
      %s96 = sphi 0, %s82
      %s104 = sphi 0, %s106
      %s107 = sphi 0, %s104
      %s108 = sphi 0, %s107
      %s124 = sphi 0, %s108
    $region4: #{tpu_custom_call.1} parent=1 // loop_header_branch
      %15 = sbr.rel (%p13) target = $region8
    $region5: #{tpu_custom_call.1} parent=1 // loop_body
      %s17 = ssub.s32 %s12, 1
      %s18 = ssub.s32 %s12, 2
      %s25 = sadd.s32 1, %s20
      %p26 = scmp.ge.s32.totalorder %s25, 2
      %s27 = scalar_select %p26, 0, %s25
      %s28 = sadd.s32 1, %s19
      %s29 = scalar_select %p26, %s28, %s19
      %p30 = scmp.ge.s32.totalorder %s29, 2
      %s31 = scalar_select %p30, 0, %s29
      %s32 = ssub.s32 %s19, %s31
      %p33 = scmp.eq.s32.totalorder %s32, 0
      %s35 = sadd.s32 %s34, 1
      %s36 = scalar_select %p33, %s34, %s35
      %p39 = pneg %p33
      %p40 = scmp.eq.s32.totalorder %s12, 3
      %p41 = por %p39, %p40
      %p42 = scmp.ne.s32.totalorder %s34, %s37
      %p43 = scmp.eq.s32.totalorder %s12, 0
      %p44 = por %p42, %p43
      %p45 = scmp.ne.s32.totalorder %s34, %s37
      %p46 = scmp.eq.s32.totalorder %s17, 3
      %p47 = por %p45, %p46
      %p48 = scmp.ne.s32.totalorder %s37, %s38
      %p49 = scmp.eq.s32.totalorder %s17, 0
      %p50 = por %p48, %p49
      %p51 = scmp.ne.s32.totalorder %s37, %s38
      %p52 = scmp.eq.s32.totalorder %s18, 3
      %p53 = por %p51, %p52
      %p55 = scmp.ne.s32.totalorder %s38, %s54
      %p56 = scmp.eq.s32.totalorder %s18, 0
      %p57 = por %p55, %p56
      %s59 = sadd.s32 %s58, 1
      %p62 = scmp.eq.s32.totalorder %s12, 3
      %p63 = scmp.ne.s32.totalorder %s58, %s60
      %p64 = scmp.eq.s32.totalorder %s12, 0
      %p65 = por %p63, %p64
      %p66 = scmp.ne.s32.totalorder %s58, %s60
      %p67 = scmp.eq.s32.totalorder %s17, 3
      %p68 = por %p66, %p67
      %p69 = scmp.ne.s32.totalorder %s60, %s61
      %p70 = scmp.eq.s32.totalorder %s17, 0
      %p71 = por %p69, %p70
      %p72 = scmp.ne.s32.totalorder %s60, %s61
      %p73 = scmp.eq.s32.totalorder %s18, 3
      %p74 = por %p72, %p73
      %p76 = scmp.ne.s32.totalorder %s61, %s75
      %p77 = scmp.eq.s32.totalorder %s18, 0
      %p78 = por %p76, %p77
      %s80 = sadd.s32 %s79, 1
      %p83 = scmp.eq.s32.totalorder %s12, 3
      %p84 = scmp.ne.s32.totalorder %s79, %s81
      %p85 = scmp.eq.s32.totalorder %s12, 0
      %p86 = por %p84, %p85
      %p87 = scmp.ne.s32.totalorder %s79, %s81
      %p88 = scmp.eq.s32.totalorder %s17, 3
      %p89 = por %p87, %p88
      %p90 = scmp.ne.s32.totalorder %s81, %s82
      %p91 = scmp.eq.s32.totalorder %s17, 0
      %p92 = por %p90, %p91
      %p93 = scmp.ne.s32.totalorder %s81, %s82
      %p94 = scmp.eq.s32.totalorder %s18, 3
      %p95 = por %p93, %p94
      %p97 = scmp.ne.s32.totalorder %s82, %s96
      %p98 = scmp.eq.s32.totalorder %s18, 0
      %p99 = por %p97, %p98
      %s100 = ssub.s32 %s19, %s31
      %s101 = ssub.s32 %s20, %s27
      %s102 = sor.u32 %s100, %s101
      %p103 = scmp.eq.s32.totalorder %s102, 0
      %s105 = sadd.s32 %s104, 1
      %s106 = scalar_select %p103, %s104, %s105
      %p109 = pneg %p103
      %p110 = scmp.eq.s32.totalorder %s12, 3
      %p111 = por %p109, %p110
      %p112 = scmp.ne.s32.totalorder %s104, %s107
      %p113 = scmp.eq.s32.totalorder %s12, 0
      %p114 = por %p112, %p113
      %p115 = scmp.ne.s32.totalorder %s104, %s107
      %p116 = scmp.eq.s32.totalorder %s17, 3
      %p117 = por %p115, %p116
      %p118 = scmp.ne.s32.totalorder %s107, %s108
      %p119 = scmp.eq.s32.totalorder %s17, 0
      %p120 = por %p118, %p119
      %p121 = scmp.ne.s32.totalorder %s107, %s108
      %p122 = scmp.eq.s32.totalorder %s18, 3
      %p123 = por %p121, %p122
      %p125 = scmp.ne.s32.totalorder %s108, %s124
      %p126 = scmp.eq.s32.totalorder %s18, 0
      %p127 = por %p125, %p126
      %p128 = scmp.le.s32.totalorder 1, %s12
      %p129 = scmp.lt.s32.totalorder %s12, 5
      %p130 = pnand %p128, %p129
      %p131 = pneg %p130
      // Predicated region
      $region9: #{tpu_custom_call.1} parent=5 // pred_check
        _
      $region10: #{tpu_custom_call.1} parent=5 // pred_check_branch
        %133 = sbr.rel (%p130) target = $region12
      $region11: #{tpu_custom_call.1} parent=5 // pred_region
        %s134 = ssub.s32 %s12, 1
        // Predicated region
        $region13: #{tpu_custom_call.1} parent=11 // pred_check
          %p135 = pneg %p71
        $region14: #{tpu_custom_call.1} parent=11 // pred_check_branch
          %137 = sbr.rel (%p135) target = $region16
        $region15: #{tpu_custom_call.1} parent=11 // pred_region
          _
        $region16: #{tpu_custom_call.1} parent=11 // pred_fallthru
          _
        // Predicated region
        $region17: #{tpu_custom_call.1} parent=11 // pred_check
          %p138 = pneg %p92
        $region18: #{tpu_custom_call.1} parent=11 // pred_check_branch
          %140 = sbr.rel (%p138) target = $region20
        $region19: #{tpu_custom_call.1} parent=11 // pred_region
          _
        $region20: #{tpu_custom_call.1} parent=11 // pred_fallthru
          _
      $region12: #{tpu_custom_call.1} parent=5 // pred_fallthru
        _
      %p141 = scmp.lt.s32.totalorder %s12, 4
      // Predicated region
      $region21: #{tpu_custom_call.1} parent=5 // pred_check
        %p142 = pneg %p141
      $region22: #{tpu_custom_call.1} parent=5 // pred_check_branch
        %144 = sbr.rel (%p142) target = $region24
      $region23: #{tpu_custom_call.1} parent=5 // pred_region
        // Predicated region
        $region25: #{tpu_custom_call.1} parent=23 // pred_check
          %p145 = pneg %p44
        $region26: #{tpu_custom_call.1} parent=23 // pred_check_branch
          %147 = sbr.rel (%p145) target = $region28
        $region27: #{tpu_custom_call.1} parent=23 // pred_region
          %p148 = scmp.lt.s32.totalorder %s19, 1
          %s149 = scalar_select %p148, %s19, 1
          %s150 = smul.addr %s149, 54
          %s151 = smul.addr %s150, 8
          %s152 = scalar_lea.vmem %s0, %s151
        $region28: #{tpu_custom_call.1} parent=23 // pred_fallthru
          _
      $region24: #{tpu_custom_call.1} parent=5 // pred_fallthru
        _
      %p153 = scmp.le.s32.totalorder 1, %s12
      %p154 = scmp.lt.s32.totalorder %s12, 5
      %p155 = pnand %p153, %p154
      %p156 = pneg %p155
      // Predicated region
      $region29: #{tpu_custom_call.1} parent=5 // pred_check
        _
      $region30: #{tpu_custom_call.1} parent=5 // pred_check_branch
        %158 = sbr.rel (%p155) target = $region32
      $region31: #{tpu_custom_call.1} parent=5 // pred_region
        %s159 = ssub.s32 %s12, 1
        %p160 = scmp.lt.s32.totalorder %s21, 1
        %s161 = scalar_select %p160, %s21, 1
        %s162 = smul.addr %s161, 54
        %s163 = smul.addr %s162, 8
        %s164 = scalar_lea.vmem %s0, %s163
        %p165 = pneg %p50
        %p166 = pneg %p47
        %p167 = pneg %p71
        %p168 = pneg %p68
        %p169 = pneg %p92
        %p170 = pneg %p89
        %p171 = pneg %p120
        %p172 = pneg %p117
        %s173 = sand.u32 %s107, 1
        %s174 = scalar_lea.sflag [#allocation3], %s173
        %s175 = sand.u32 %s107, 1
        %s176 = smul.addr %s175, 16
        %s177 = scalar_lea.vmem [#allocation2], %s176
        %p178 = scmp.lt.s32.totalorder %s21, 1
        %s179 = scalar_select %p178, %s21, 1
        %s180 = smul.addr %s179, 54
        %s181 = smul.addr %s180, 8
        %s182 = scalar_lea.vmem %s0, %s181
        %s183 = smul.u32 %s22, 8
        %s184 = smul.u32 %s183, 24
        %s185 = scalar_lea.vmem %s182, %s184
        %v186 = vld [vmem:[%s185] sm:$0xff]
        %v187 = vld [vmem:[%s185 + $0x8] sm:$0xff]
        %v188 = vld [vmem:[%s185 + $0x10] sm:$0x3]
        %v189 = vld [vmem:[%s185 + $0x18] sm:$0xff]
        %v190 = vld [vmem:[%s185 + $0x20] sm:$0xff]
        %v191 = vld [vmem:[%s185 + $0x28] sm:$0x3]
        %v192 = vld [vmem:[%s185 + $0x30] sm:$0xff]
        %v193 = vld [vmem:[%s185 + $0x38] sm:$0xff]
        %v194 = vld [vmem:[%s185 + $0x40] sm:$0x3]
        %v195 = vld [vmem:[%s185 + $0x48] sm:$0xff]
        %v196 = vld [vmem:[%s185 + $0x50] sm:$0xff]
        %v197 = vld [vmem:[%s185 + $0x58] sm:$0x3]
        %v198 = vld [vmem:[%s185 + $0x60] sm:$0xff]
        %v199 = vld [vmem:[%s185 + $0x68] sm:$0xff]
        %v200 = vld [vmem:[%s185 + $0x70] sm:$0x3]
        %v201 = vld [vmem:[%s185 + $0x78] sm:$0xff]
        %v202 = vld [vmem:[%s185 + $0x80] sm:$0xff]
        %v203 = vld [vmem:[%s185 + $0x88] sm:$0x3]
        %v204 = vld [vmem:[%s185 + $0x90] sm:$0xff]
        %v205 = vld [vmem:[%s185 + $0x98] sm:$0xff]
        %v206 = vld [vmem:[%s185 + $0xa0] sm:$0x3]
        %v207 = vld [vmem:[%s185 + $0xa8] sm:$0xff]
        %v208 = vld [vmem:[%s185 + $0xb0] sm:$0xff]
        %v209 = vld [vmem:[%s185 + $0xb8] sm:$0x3]
        %vm234 = vcmask 1046528
        %v235 = vrot.slane %v186, 1
        %v236 = vrot.slane %v187, 1
        %v237 = vsel %vm234, %v235, %v236
        %v238 = vrot.slane %v188, 1
        %v239 = vsel %vm234, %v236, %v238
        %v240 = vrot.slane %v189, 1
        %v241 = vrot.slane %v190, 1
        %v242 = vsel %vm234, %v240, %v241
        %v243 = vrot.slane %v191, 1
        %v244 = vsel %vm234, %v241, %v243
        %v245 = vrot.slane %v192, 1
        %v246 = vrot.slane %v193, 1
        %v247 = vsel %vm234, %v245, %v246
        %v248 = vrot.slane %v194, 1
        %v249 = vsel %vm234, %v246, %v248
        %v250 = vrot.slane %v195, 1
        %v251 = vrot.slane %v196, 1
        %v252 = vsel %vm234, %v250, %v251
        %v253 = vrot.slane %v197, 1
        %v254 = vsel %vm234, %v251, %v253
        %v255 = vrot.slane %v198, 1
        %v256 = vrot.slane %v199, 1
        %v257 = vsel %vm234, %v255, %v256
        %v258 = vrot.slane %v200, 1
        %v259 = vsel %vm234, %v256, %v258
        %v260 = vrot.slane %v201, 1
        %v261 = vrot.slane %v202, 1
        %v262 = vsel %vm234, %v260, %v261
        %v263 = vrot.slane %v203, 1
        %v264 = vsel %vm234, %v261, %v263
        %v265 = vrot.slane %v204, 1
        %v266 = vrot.slane %v205, 1
        %v267 = vsel %vm234, %v265, %v266
        %v268 = vrot.slane %v206, 1
        %v269 = vsel %vm234, %v266, %v268
        %v270 = vrot.slane %v207, 1
        %v271 = vrot.slane %v208, 1
        %v272 = vsel %vm234, %v270, %v271
        %v273 = vrot.slane %v209, 1
        %v274 = vsel %vm234, %v271, %v273
        %vm275 = vcmask 1045504
        %v276 = vrot.slane %v186, 2
        %v277 = vrot.slane %v187, 2
        %v278 = vsel %vm275, %v276, %v277
        %v279 = vrot.slane %v188, 2
        %v280 = vsel %vm275, %v277, %v279
        %v281 = vrot.slane %v189, 2
        %v282 = vrot.slane %v190, 2
        %v283 = vsel %vm275, %v281, %v282
        %v284 = vrot.slane %v191, 2
        %v285 = vsel %vm275, %v282, %v284
        %v286 = vrot.slane %v192, 2
        %v287 = vrot.slane %v193, 2
        %v288 = vsel %vm275, %v286, %v287
        %v289 = vrot.slane %v194, 2
        %v290 = vsel %vm275, %v287, %v289
        %v291 = vrot.slane %v195, 2
        %v292 = vrot.slane %v196, 2
        %v293 = vsel %vm275, %v291, %v292
        %v294 = vrot.slane %v197, 2
        %v295 = vsel %vm275, %v292, %v294
        %v296 = vrot.slane %v198, 2
        %v297 = vrot.slane %v199, 2
        %v298 = vsel %vm275, %v296, %v297
        %v299 = vrot.slane %v200, 2
        %v300 = vsel %vm275, %v297, %v299
        %v301 = vrot.slane %v201, 2
        %v302 = vrot.slane %v202, 2
        %v303 = vsel %vm275, %v301, %v302
        %v304 = vrot.slane %v203, 2
        %v305 = vsel %vm275, %v302, %v304
        %v306 = vrot.slane %v204, 2
        %v307 = vrot.slane %v205, 2
        %v308 = vsel %vm275, %v306, %v307
        %v309 = vrot.slane %v206, 2
        %v310 = vsel %vm275, %v307, %v309
        %v311 = vrot.slane %v207, 2
        %v312 = vrot.slane %v208, 2
        %v313 = vsel %vm275, %v311, %v312
        %v314 = vrot.slane %v209, 2
        %v315 = vsel %vm275, %v312, %v314
        %s316 = sadd.s32 %s183, 1
        %s317 = smul.u32 %s316, 24
        %s318 = scalar_lea.vmem %s182, %s317
        %v319 = vld [vmem:[%s318] sm:$0xff]
        %v320 = vld [vmem:[%s318 + $0x8] sm:$0xff]
        %v321 = vld [vmem:[%s318 + $0x10] sm:$0x3]
        %v322 = vld [vmem:[%s318 + $0x18] sm:$0xff]
        %v323 = vld [vmem:[%s318 + $0x20] sm:$0xff]
        %v324 = vld [vmem:[%s318 + $0x28] sm:$0x3]
        %v325 = vld [vmem:[%s318 + $0x30] sm:$0xff]
        %v326 = vld [vmem:[%s318 + $0x38] sm:$0xff]
        %v327 = vld [vmem:[%s318 + $0x40] sm:$0x3]
        %v328 = vld [vmem:[%s318 + $0x48] sm:$0xff]
        %v329 = vld [vmem:[%s318 + $0x50] sm:$0xff]
        %v330 = vld [vmem:[%s318 + $0x58] sm:$0x3]
        %v331 = vld [vmem:[%s318 + $0x60] sm:$0xff]
        %v332 = vld [vmem:[%s318 + $0x68] sm:$0xff]
        %v333 = vld [vmem:[%s318 + $0x70] sm:$0x3]
        %v334 = vld [vmem:[%s318 + $0x78] sm:$0xff]
        %v335 = vld [vmem:[%s318 + $0x80] sm:$0xff]
        %v336 = vld [vmem:[%s318 + $0x88] sm:$0x3]
        %v337 = vld [vmem:[%s318 + $0x90] sm:$0xff]
        %v338 = vld [vmem:[%s318 + $0x98] sm:$0xff]
        %v339 = vld [vmem:[%s318 + $0xa0] sm:$0x3]
        %v340 = vld [vmem:[%s318 + $0xa8] sm:$0xff]
        %v341 = vld [vmem:[%s318 + $0xb0] sm:$0xff]
        %v342 = vld [vmem:[%s318 + $0xb8] sm:$0x3]
        %v367 = vrot.slane %v319, 1
        %v368 = vrot.slane %v320, 1
        %v369 = vsel %vm234, %v367, %v368
        %v370 = vrot.slane %v321, 1
        %v371 = vsel %vm234, %v368, %v370
        %v372 = vrot.slane %v322, 1
        %v373 = vrot.slane %v323, 1
        %v374 = vsel %vm234, %v372, %v373
        %v375 = vrot.slane %v324, 1
        %v376 = vsel %vm234, %v373, %v375
        %v377 = vrot.slane %v325, 1
        %v378 = vrot.slane %v326, 1
        %v379 = vsel %vm234, %v377, %v378
        %v380 = vrot.slane %v327, 1
        %v381 = vsel %vm234, %v378, %v380
        %v382 = vrot.slane %v328, 1
        %v383 = vrot.slane %v329, 1
        %v384 = vsel %vm234, %v382, %v383
        %v385 = vrot.slane %v330, 1
        %v386 = vsel %vm234, %v383, %v385
        %v387 = vrot.slane %v331, 1
        %v388 = vrot.slane %v332, 1
        %v389 = vsel %vm234, %v387, %v388
        %v390 = vrot.slane %v333, 1
        %v391 = vsel %vm234, %v388, %v390
        %v392 = vrot.slane %v334, 1
        %v393 = vrot.slane %v335, 1
        %v394 = vsel %vm234, %v392, %v393
        %v395 = vrot.slane %v336, 1
        %v396 = vsel %vm234, %v393, %v395
        %v397 = vrot.slane %v337, 1
        %v398 = vrot.slane %v338, 1
        %v399 = vsel %vm234, %v397, %v398
        %v400 = vrot.slane %v339, 1
        %v401 = vsel %vm234, %v398, %v400
        %v402 = vrot.slane %v340, 1
        %v403 = vrot.slane %v341, 1
        %v404 = vsel %vm234, %v402, %v403
        %v405 = vrot.slane %v342, 1
        %v406 = vsel %vm234, %v403, %v405
        %v407 = vrot.slane %v319, 2
        %v408 = vrot.slane %v320, 2
        %v409 = vsel %vm275, %v407, %v408
        %v410 = vrot.slane %v321, 2
        %v411 = vsel %vm275, %v408, %v410
        %v412 = vrot.slane %v322, 2
        %v413 = vrot.slane %v323, 2
        %v414 = vsel %vm275, %v412, %v413
        %v415 = vrot.slane %v324, 2
        %v416 = vsel %vm275, %v413, %v415
        %v417 = vrot.slane %v325, 2
        %v418 = vrot.slane %v326, 2
        %v419 = vsel %vm275, %v417, %v418
        %v420 = vrot.slane %v327, 2
        %v421 = vsel %vm275, %v418, %v420
        %v422 = vrot.slane %v328, 2
        %v423 = vrot.slane %v329, 2
        %v424 = vsel %vm275, %v422, %v423
        %v425 = vrot.slane %v330, 2
        %v426 = vsel %vm275, %v423, %v425
        %v427 = vrot.slane %v331, 2
        %v428 = vrot.slane %v332, 2
        %v429 = vsel %vm275, %v427, %v428
        %v430 = vrot.slane %v333, 2
        %v431 = vsel %vm275, %v428, %v430
        %v432 = vrot.slane %v334, 2
        %v433 = vrot.slane %v335, 2
        %v434 = vsel %vm275, %v432, %v433
        %v435 = vrot.slane %v336, 2
        %v436 = vsel %vm275, %v433, %v435
        %v437 = vrot.slane %v337, 2
        %v438 = vrot.slane %v338, 2
        %v439 = vsel %vm275, %v437, %v438
        %v440 = vrot.slane %v339, 2
        %v441 = vsel %vm275, %v438, %v440
        %v442 = vrot.slane %v340, 2
        %v443 = vrot.slane %v341, 2
        %v444 = vsel %vm275, %v442, %v443
        %v445 = vrot.slane %v342, 2
        %v446 = vsel %vm275, %v443, %v445
        %s447 = sadd.s32 %s183, 2
        %s448 = smul.u32 %s447, 24
        %s449 = scalar_lea.vmem %s182, %s448
        %v450 = vld [vmem:[%s449] sm:$0xff]
        %v451 = vld [vmem:[%s449 + $0x8] sm:$0xff]
        %v452 = vld [vmem:[%s449 + $0x10] sm:$0x3]
        %v453 = vld [vmem:[%s449 + $0x18] sm:$0xff]
        %v454 = vld [vmem:[%s449 + $0x20] sm:$0xff]
        %v455 = vld [vmem:[%s449 + $0x28] sm:$0x3]
        %v456 = vld [vmem:[%s449 + $0x30] sm:$0xff]
        %v457 = vld [vmem:[%s449 + $0x38] sm:$0xff]
        %v458 = vld [vmem:[%s449 + $0x40] sm:$0x3]
        %v459 = vld [vmem:[%s449 + $0x48] sm:$0xff]
        %v460 = vld [vmem:[%s449 + $0x50] sm:$0xff]
        %v461 = vld [vmem:[%s449 + $0x58] sm:$0x3]
        %v462 = vld [vmem:[%s449 + $0x60] sm:$0xff]
        %v463 = vld [vmem:[%s449 + $0x68] sm:$0xff]
        %v464 = vld [vmem:[%s449 + $0x70] sm:$0x3]
        %v465 = vld [vmem:[%s449 + $0x78] sm:$0xff]
        %v466 = vld [vmem:[%s449 + $0x80] sm:$0xff]
        %v467 = vld [vmem:[%s449 + $0x88] sm:$0x3]
        %v468 = vld [vmem:[%s449 + $0x90] sm:$0xff]
        %v469 = vld [vmem:[%s449 + $0x98] sm:$0xff]
        %v470 = vld [vmem:[%s449 + $0xa0] sm:$0x3]
        %v471 = vld [vmem:[%s449 + $0xa8] sm:$0xff]
        %v472 = vld [vmem:[%s449 + $0xb0] sm:$0xff]
        %v473 = vld [vmem:[%s449 + $0xb8] sm:$0x3]
        %v498 = vrot.slane %v450, 1
        %v499 = vrot.slane %v451, 1
        %v500 = vsel %vm234, %v498, %v499
        %v501 = vrot.slane %v452, 1
        %v502 = vsel %vm234, %v499, %v501
        %v503 = vrot.slane %v453, 1
        %v504 = vrot.slane %v454, 1
        %v505 = vsel %vm234, %v503, %v504
        %v506 = vrot.slane %v455, 1
        %v507 = vsel %vm234, %v504, %v506
        %v508 = vrot.slane %v456, 1
        %v509 = vrot.slane %v457, 1
        %v510 = vsel %vm234, %v508, %v509
        %v511 = vrot.slane %v458, 1
        %v512 = vsel %vm234, %v509, %v511
        %v513 = vrot.slane %v459, 1
        %v514 = vrot.slane %v460, 1
        %v515 = vsel %vm234, %v513, %v514
        %v516 = vrot.slane %v461, 1
        %v517 = vsel %vm234, %v514, %v516
        %v518 = vrot.slane %v462, 1
        %v519 = vrot.slane %v463, 1
        %v520 = vsel %vm234, %v518, %v519
        %v521 = vrot.slane %v464, 1
        %v522 = vsel %vm234, %v519, %v521
        %v523 = vrot.slane %v465, 1
        %v524 = vrot.slane %v466, 1
        %v525 = vsel %vm234, %v523, %v524
        %v526 = vrot.slane %v467, 1
        %v527 = vsel %vm234, %v524, %v526
        %v528 = vrot.slane %v468, 1
        %v529 = vrot.slane %v469, 1
        %v530 = vsel %vm234, %v528, %v529
        %v531 = vrot.slane %v470, 1
        %v532 = vsel %vm234, %v529, %v531
        %v533 = vrot.slane %v471, 1
        %v534 = vrot.slane %v472, 1
        %v535 = vsel %vm234, %v533, %v534
        %v536 = vrot.slane %v473, 1
        %v537 = vsel %vm234, %v534, %v536
        %v538 = vrot.slane %v450, 2
        %v539 = vrot.slane %v451, 2
        %v540 = vsel %vm275, %v538, %v539
        %v541 = vrot.slane %v452, 2
        %v542 = vsel %vm275, %v539, %v541
        %v543 = vrot.slane %v453, 2
        %v544 = vrot.slane %v454, 2
        %v545 = vsel %vm275, %v543, %v544
        %v546 = vrot.slane %v455, 2
        %v547 = vsel %vm275, %v544, %v546
        %v548 = vrot.slane %v456, 2
        %v549 = vrot.slane %v457, 2
        %v550 = vsel %vm275, %v548, %v549
        %v551 = vrot.slane %v458, 2
        %v552 = vsel %vm275, %v549, %v551
        %v553 = vrot.slane %v459, 2
        %v554 = vrot.slane %v460, 2
        %v555 = vsel %vm275, %v553, %v554
        %v556 = vrot.slane %v461, 2
        %v557 = vsel %vm275, %v554, %v556
        %v558 = vrot.slane %v462, 2
        %v559 = vrot.slane %v463, 2
        %v560 = vsel %vm275, %v558, %v559
        %v561 = vrot.slane %v464, 2
        %v562 = vsel %vm275, %v559, %v561
        %v563 = vrot.slane %v465, 2
        %v564 = vrot.slane %v466, 2
        %v565 = vsel %vm275, %v563, %v564
        %v566 = vrot.slane %v467, 2
        %v567 = vsel %vm275, %v564, %v566
        %v568 = vrot.slane %v468, 2
        %v569 = vrot.slane %v469, 2
        %v570 = vsel %vm275, %v568, %v569
        %v571 = vrot.slane %v470, 2
        %v572 = vsel %vm275, %v569, %v571
        %v573 = vrot.slane %v471, 2
        %v574 = vrot.slane %v472, 2
        %v575 = vsel %vm275, %v573, %v574
        %v576 = vrot.slane %v473, 2
        %v577 = vsel %vm275, %v574, %v576
        %578 = vrot.lane.b32.xlu0 %v237, 4
        %v579 = vpop.permute.xlu0 %578
        %580 = vrot.lane.b32.xlu0 %v239, 4
        %v581 = vpop.permute.xlu0 %580
        %582 = vrot.lane.b32.xlu0 %v242, 4
        %v583 = vpop.permute.xlu0 %582
        %584 = vrot.lane.b32.xlu0 %v244, 4
        %v585 = vpop.permute.xlu0 %584
        %586 = vrot.lane.b32.xlu0 %v247, 4
        %v587 = vpop.permute.xlu0 %586
        %588 = vrot.lane.b32.xlu0 %v249, 4
        %v589 = vpop.permute.xlu0 %588
        %590 = vrot.lane.b32.xlu0 %v252, 4
        %v591 = vpop.permute.xlu0 %590
        %592 = vrot.lane.b32.xlu0 %v254, 4
        %v593 = vpop.permute.xlu0 %592
        %594 = vrot.lane.b32.xlu0 %v257, 4
        %v595 = vpop.permute.xlu0 %594
        %596 = vrot.lane.b32.xlu0 %v259, 4
        %v597 = vpop.permute.xlu0 %596
        %598 = vrot.lane.b32.xlu0 %v262, 4
        %v599 = vpop.permute.xlu0 %598
        %600 = vrot.lane.b32.xlu0 %v264, 4
        %v601 = vpop.permute.xlu0 %600
        %602 = vrot.lane.b32.xlu0 %v267, 4
        %v603 = vpop.permute.xlu0 %602
        %604 = vrot.lane.b32.xlu0 %v269, 4
        %v605 = vpop.permute.xlu0 %604
        %606 = vrot.lane.b32.xlu0 %v272, 4
        %v607 = vpop.permute.xlu0 %606
        %608 = vrot.lane.b32.xlu0 %v274, 4
        %v609 = vpop.permute.xlu0 %608
        %626 = vrot.lane.b32.xlu0 %v278, 8
        %v627 = vpop.permute.xlu0 %626
        %628 = vrot.lane.b32.xlu0 %v280, 8
        %v629 = vpop.permute.xlu0 %628
        %630 = vrot.lane.b32.xlu0 %v283, 8
        %v631 = vpop.permute.xlu0 %630
        %632 = vrot.lane.b32.xlu0 %v285, 8
        %v633 = vpop.permute.xlu0 %632
        %634 = vrot.lane.b32.xlu0 %v288, 8
        %v635 = vpop.permute.xlu0 %634
        %636 = vrot.lane.b32.xlu0 %v290, 8
        %v637 = vpop.permute.xlu0 %636
        %638 = vrot.lane.b32.xlu0 %v293, 8
        %v639 = vpop.permute.xlu0 %638
        %640 = vrot.lane.b32.xlu0 %v295, 8
        %v641 = vpop.permute.xlu0 %640
        %642 = vrot.lane.b32.xlu0 %v298, 8
        %v643 = vpop.permute.xlu0 %642
        %644 = vrot.lane.b32.xlu0 %v300, 8
        %v645 = vpop.permute.xlu0 %644
        %646 = vrot.lane.b32.xlu0 %v303, 8
        %v647 = vpop.permute.xlu0 %646
        %648 = vrot.lane.b32.xlu0 %v305, 8
        %v649 = vpop.permute.xlu0 %648
        %650 = vrot.lane.b32.xlu0 %v308, 8
        %v651 = vpop.permute.xlu0 %650
        %652 = vrot.lane.b32.xlu0 %v310, 8
        %v653 = vpop.permute.xlu0 %652
        %654 = vrot.lane.b32.xlu0 %v313, 8
        %v655 = vpop.permute.xlu0 %654
        %656 = vrot.lane.b32.xlu0 %v315, 8
        %v657 = vpop.permute.xlu0 %656
        %674 = vrot.lane.b32.xlu0 %v319, 12
        %v675 = vpop.permute.xlu0 %674
        %676 = vrot.lane.b32.xlu0 %v320, 12
        %v677 = vpop.permute.xlu0 %676
        %678 = vrot.lane.b32.xlu0 %v322, 12
        %v679 = vpop.permute.xlu0 %678
        %680 = vrot.lane.b32.xlu0 %v323, 12
        %v681 = vpop.permute.xlu0 %680
        %682 = vrot.lane.b32.xlu0 %v325, 12
        %v683 = vpop.permute.xlu0 %682
        %684 = vrot.lane.b32.xlu0 %v326, 12
        %v685 = vpop.permute.xlu0 %684
        %686 = vrot.lane.b32.xlu0 %v328, 12
        %v687 = vpop.permute.xlu0 %686
        %688 = vrot.lane.b32.xlu0 %v329, 12
        %v689 = vpop.permute.xlu0 %688
        %690 = vrot.lane.b32.xlu0 %v331, 12
        %v691 = vpop.permute.xlu0 %690
        %692 = vrot.lane.b32.xlu0 %v332, 12
        %v693 = vpop.permute.xlu0 %692
        %694 = vrot.lane.b32.xlu0 %v334, 12
        %v695 = vpop.permute.xlu0 %694
        %696 = vrot.lane.b32.xlu0 %v335, 12
        %v697 = vpop.permute.xlu0 %696
        %698 = vrot.lane.b32.xlu0 %v337, 12
        %v699 = vpop.permute.xlu0 %698
        %700 = vrot.lane.b32.xlu0 %v338, 12
        %v701 = vpop.permute.xlu0 %700
        %702 = vrot.lane.b32.xlu0 %v340, 12
        %v703 = vpop.permute.xlu0 %702
        %704 = vrot.lane.b32.xlu0 %v341, 12
        %v705 = vpop.permute.xlu0 %704
        %722 = vrot.lane.b32.xlu0 %v369, 16
        %v723 = vpop.permute.xlu0 %722
        %724 = vrot.lane.b32.xlu0 %v371, 16
        %v725 = vpop.permute.xlu0 %724
        %726 = vrot.lane.b32.xlu0 %v374, 16
        %v727 = vpop.permute.xlu0 %726
        %728 = vrot.lane.b32.xlu0 %v376, 16
        %v729 = vpop.permute.xlu0 %728
        %730 = vrot.lane.b32.xlu0 %v379, 16
        %v731 = vpop.permute.xlu0 %730
        %732 = vrot.lane.b32.xlu0 %v381, 16
        %v733 = vpop.permute.xlu0 %732
        %734 = vrot.lane.b32.xlu0 %v384, 16
        %v735 = vpop.permute.xlu0 %734
        %736 = vrot.lane.b32.xlu0 %v386, 16
        %v737 = vpop.permute.xlu0 %736
        %738 = vrot.lane.b32.xlu0 %v389, 16
        %v739 = vpop.permute.xlu0 %738
        %740 = vrot.lane.b32.xlu0 %v391, 16
        %v741 = vpop.permute.xlu0 %740
        %742 = vrot.lane.b32.xlu0 %v394, 16
        %v743 = vpop.permute.xlu0 %742
        %744 = vrot.lane.b32.xlu0 %v396, 16
        %v745 = vpop.permute.xlu0 %744
        %746 = vrot.lane.b32.xlu0 %v399, 16
        %v747 = vpop.permute.xlu0 %746
        %748 = vrot.lane.b32.xlu0 %v401, 16
        %v749 = vpop.permute.xlu0 %748
        %750 = vrot.lane.b32.xlu0 %v404, 16
        %v751 = vpop.permute.xlu0 %750
        %752 = vrot.lane.b32.xlu0 %v406, 16
        %v753 = vpop.permute.xlu0 %752
        %770 = vrot.lane.b32.xlu0 %v409, 20
        %v771 = vpop.permute.xlu0 %770
        %772 = vrot.lane.b32.xlu0 %v411, 20
        %v773 = vpop.permute.xlu0 %772
        %774 = vrot.lane.b32.xlu0 %v414, 20
        %v775 = vpop.permute.xlu0 %774
        %776 = vrot.lane.b32.xlu0 %v416, 20
        %v777 = vpop.permute.xlu0 %776
        %778 = vrot.lane.b32.xlu0 %v419, 20
        %v779 = vpop.permute.xlu0 %778
        %780 = vrot.lane.b32.xlu0 %v421, 20
        %v781 = vpop.permute.xlu0 %780
        %782 = vrot.lane.b32.xlu0 %v424, 20
        %v783 = vpop.permute.xlu0 %782
        %784 = vrot.lane.b32.xlu0 %v426, 20
        %v785 = vpop.permute.xlu0 %784
        %786 = vrot.lane.b32.xlu0 %v429, 20
        %v787 = vpop.permute.xlu0 %786
        %788 = vrot.lane.b32.xlu0 %v431, 20
        %v789 = vpop.permute.xlu0 %788
        %790 = vrot.lane.b32.xlu0 %v434, 20
        %v791 = vpop.permute.xlu0 %790
        %792 = vrot.lane.b32.xlu0 %v436, 20
        %v793 = vpop.permute.xlu0 %792
        %794 = vrot.lane.b32.xlu0 %v439, 20
        %v795 = vpop.permute.xlu0 %794
        %796 = vrot.lane.b32.xlu0 %v441, 20
        %v797 = vpop.permute.xlu0 %796
        %798 = vrot.lane.b32.xlu0 %v444, 20
        %v799 = vpop.permute.xlu0 %798
        %800 = vrot.lane.b32.xlu0 %v446, 20
        %v801 = vpop.permute.xlu0 %800
        %818 = vrot.lane.b32.xlu0 %v450, 24
        %v819 = vpop.permute.xlu0 %818
        %820 = vrot.lane.b32.xlu0 %v451, 24
        %v821 = vpop.permute.xlu0 %820
        %822 = vrot.lane.b32.xlu0 %v453, 24
        %v823 = vpop.permute.xlu0 %822
        %824 = vrot.lane.b32.xlu0 %v454, 24
        %v825 = vpop.permute.xlu0 %824
        %826 = vrot.lane.b32.xlu0 %v456, 24
        %v827 = vpop.permute.xlu0 %826
        %828 = vrot.lane.b32.xlu0 %v457, 24
        %v829 = vpop.permute.xlu0 %828
        %830 = vrot.lane.b32.xlu0 %v459, 24
        %v831 = vpop.permute.xlu0 %830
        %832 = vrot.lane.b32.xlu0 %v460, 24
        %v833 = vpop.permute.xlu0 %832
        %834 = vrot.lane.b32.xlu0 %v462, 24
        %v835 = vpop.permute.xlu0 %834
        %836 = vrot.lane.b32.xlu0 %v463, 24
        %v837 = vpop.permute.xlu0 %836
        %838 = vrot.lane.b32.xlu0 %v465, 24
        %v839 = vpop.permute.xlu0 %838
        %840 = vrot.lane.b32.xlu0 %v466, 24
        %v841 = vpop.permute.xlu0 %840
        %842 = vrot.lane.b32.xlu0 %v468, 24
        %v843 = vpop.permute.xlu0 %842
        %844 = vrot.lane.b32.xlu0 %v469, 24
        %v845 = vpop.permute.xlu0 %844
        %846 = vrot.lane.b32.xlu0 %v471, 24
        %v847 = vpop.permute.xlu0 %846
        %848 = vrot.lane.b32.xlu0 %v472, 24
        %v849 = vpop.permute.xlu0 %848
        %866 = vrot.lane.b32.xlu0 %v500, 28
        %v867 = vpop.permute.xlu0 %866
        %868 = vrot.lane.b32.xlu0 %v502, 28
        %v869 = vpop.permute.xlu0 %868
        %870 = vrot.lane.b32.xlu0 %v505, 28
        %v871 = vpop.permute.xlu0 %870
        %872 = vrot.lane.b32.xlu0 %v507, 28
        %v873 = vpop.permute.xlu0 %872
        %874 = vrot.lane.b32.xlu0 %v510, 28
        %v875 = vpop.permute.xlu0 %874
        %876 = vrot.lane.b32.xlu0 %v512, 28
        %v877 = vpop.permute.xlu0 %876
        %878 = vrot.lane.b32.xlu0 %v515, 28
        %v879 = vpop.permute.xlu0 %878
        %880 = vrot.lane.b32.xlu0 %v517, 28
        %v881 = vpop.permute.xlu0 %880
        %882 = vrot.lane.b32.xlu0 %v520, 28
        %v883 = vpop.permute.xlu0 %882
        %884 = vrot.lane.b32.xlu0 %v522, 28
        %v885 = vpop.permute.xlu0 %884
        %886 = vrot.lane.b32.xlu0 %v525, 28
        %v887 = vpop.permute.xlu0 %886
        %888 = vrot.lane.b32.xlu0 %v527, 28
        %v889 = vpop.permute.xlu0 %888
        %890 = vrot.lane.b32.xlu0 %v530, 28
        %v891 = vpop.permute.xlu0 %890
        %892 = vrot.lane.b32.xlu0 %v532, 28
        %v893 = vpop.permute.xlu0 %892
        %894 = vrot.lane.b32.xlu0 %v535, 28
        %v895 = vpop.permute.xlu0 %894
        %896 = vrot.lane.b32.xlu0 %v537, 28
        %v897 = vpop.permute.xlu0 %896
        %914 = vrot.lane.b32.xlu0 %v540, 32
        %v915 = vpop.permute.xlu0 %914
        %916 = vrot.lane.b32.xlu0 %v542, 32
        %v917 = vpop.permute.xlu0 %916
        %918 = vrot.lane.b32.xlu0 %v545, 32
        %v919 = vpop.permute.xlu0 %918
        %920 = vrot.lane.b32.xlu0 %v547, 32
        %v921 = vpop.permute.xlu0 %920
        %922 = vrot.lane.b32.xlu0 %v550, 32
        %v923 = vpop.permute.xlu0 %922
        %924 = vrot.lane.b32.xlu0 %v552, 32
        %v925 = vpop.permute.xlu0 %924
        %926 = vrot.lane.b32.xlu0 %v555, 32
        %v927 = vpop.permute.xlu0 %926
        %928 = vrot.lane.b32.xlu0 %v557, 32
        %v929 = vpop.permute.xlu0 %928
        %930 = vrot.lane.b32.xlu0 %v560, 32
        %v931 = vpop.permute.xlu0 %930
        %932 = vrot.lane.b32.xlu0 %v562, 32
        %v933 = vpop.permute.xlu0 %932
        %934 = vrot.lane.b32.xlu0 %v565, 32
        %v935 = vpop.permute.xlu0 %934
        %936 = vrot.lane.b32.xlu0 %v567, 32
        %v937 = vpop.permute.xlu0 %936
        %938 = vrot.lane.b32.xlu0 %v570, 32
        %v939 = vpop.permute.xlu0 %938
        %940 = vrot.lane.b32.xlu0 %v572, 32
        %v941 = vpop.permute.xlu0 %940
        %942 = vrot.lane.b32.xlu0 %v575, 32
        %v943 = vpop.permute.xlu0 %942
        %944 = vrot.lane.b32.xlu0 %v577, 32
        %v945 = vpop.permute.xlu0 %944
        %vm962 = vcmask 31744
        %v963 = vsel %vm962, %v186, %v579
        %v964 = vsel %vm962, %v187, %v581
        %v965 = vsel %vm962, %v189, %v583
        %v966 = vsel %vm962, %v190, %v585
        %v967 = vsel %vm962, %v192, %v587
        %v968 = vsel %vm962, %v193, %v589
        %v969 = vsel %vm962, %v195, %v591
        %v970 = vsel %vm962, %v196, %v593
        %v971 = vsel %vm962, %v198, %v595
        %v972 = vsel %vm962, %v199, %v597
        %v973 = vsel %vm962, %v201, %v599
        %v974 = vsel %vm962, %v202, %v601
        %v975 = vsel %vm962, %v204, %v603
        %v976 = vsel %vm962, %v205, %v605
        %v977 = vsel %vm962, %v207, %v607
        %v978 = vsel %vm962, %v208, %v609
        %vm979 = vcmask 64512
        %v980 = vsel %vm979, %v963, %v627
        %v981 = vsel %vm979, %v964, %v629
        %v982 = vsel %vm979, %v965, %v631
        %v983 = vsel %vm979, %v966, %v633
        %v984 = vsel %vm979, %v967, %v635
        %v985 = vsel %vm979, %v968, %v637
        %v986 = vsel %vm979, %v969, %v639
        %v987 = vsel %vm979, %v970, %v641
        %v988 = vsel %vm979, %v971, %v643
        %v989 = vsel %vm979, %v972, %v645
        %v990 = vsel %vm979, %v973, %v647
        %v991 = vsel %vm979, %v974, %v649
        %v992 = vsel %vm979, %v975, %v651
        %v993 = vsel %vm979, %v976, %v653
        %v994 = vsel %vm979, %v977, %v655
        %v995 = vsel %vm979, %v978, %v657
        %vm996 = vcmask 97280
        %v997 = vsel %vm996, %v980, %v675
        %v998 = vsel %vm996, %v981, %v677
        %v999 = vsel %vm996, %v982, %v679
        %v1000 = vsel %vm996, %v983, %v681
        %v1001 = vsel %vm996, %v984, %v683
        %v1002 = vsel %vm996, %v985, %v685
        %v1003 = vsel %vm996, %v986, %v687
        %v1004 = vsel %vm996, %v987, %v689
        %v1005 = vsel %vm996, %v988, %v691
        %v1006 = vsel %vm996, %v989, %v693
        %v1007 = vsel %vm996, %v990, %v695
        %v1008 = vsel %vm996, %v991, %v697
        %v1009 = vsel %vm996, %v992, %v699
        %v1010 = vsel %vm996, %v993, %v701
        %v1011 = vsel %vm996, %v994, %v703
        %v1012 = vsel %vm996, %v995, %v705
        %vm1013 = vcmask 130048
        %v1014 = vsel %vm1013, %v997, %v723
        %v1015 = vsel %vm1013, %v998, %v725
        %v1016 = vsel %vm1013, %v999, %v727
        %v1017 = vsel %vm1013, %v1000, %v729
        %v1018 = vsel %vm1013, %v1001, %v731
        %v1019 = vsel %vm1013, %v1002, %v733
        %v1020 = vsel %vm1013, %v1003, %v735
        %v1021 = vsel %vm1013, %v1004, %v737
        %v1022 = vsel %vm1013, %v1005, %v739
        %v1023 = vsel %vm1013, %v1006, %v741
        %v1024 = vsel %vm1013, %v1007, %v743
        %v1025 = vsel %vm1013, %v1008, %v745
        %v1026 = vsel %vm1013, %v1009, %v747
        %v1027 = vsel %vm1013, %v1010, %v749
        %v1028 = vsel %vm1013, %v1011, %v751
        %v1029 = vsel %vm1013, %v1012, %v753
        %vm1030 = vcmask 162816
        %v1031 = vsel %vm1030, %v1014, %v771
        %v1032 = vsel %vm1030, %v1015, %v773
        %v1033 = vsel %vm1030, %v1016, %v775
        %v1034 = vsel %vm1030, %v1017, %v777
        %v1035 = vsel %vm1030, %v1018, %v779
        %v1036 = vsel %vm1030, %v1019, %v781
        %v1037 = vsel %vm1030, %v1020, %v783
        %v1038 = vsel %vm1030, %v1021, %v785
        %v1039 = vsel %vm1030, %v1022, %v787
        %v1040 = vsel %vm1030, %v1023, %v789
        %v1041 = vsel %vm1030, %v1024, %v791
        %v1042 = vsel %vm1030, %v1025, %v793
        %v1043 = vsel %vm1030, %v1026, %v795
        %v1044 = vsel %vm1030, %v1027, %v797
        %v1045 = vsel %vm1030, %v1028, %v799
        %v1046 = vsel %vm1030, %v1029, %v801
        %vm1047 = vcmask 195584
        %v1048 = vsel %vm1047, %v1031, %v819
        %v1049 = vsel %vm1047, %v1032, %v821
        %v1050 = vsel %vm1047, %v1033, %v823
        %v1051 = vsel %vm1047, %v1034, %v825
        %v1052 = vsel %vm1047, %v1035, %v827
        %v1053 = vsel %vm1047, %v1036, %v829
        %v1054 = vsel %vm1047, %v1037, %v831
        %v1055 = vsel %vm1047, %v1038, %v833
        %v1056 = vsel %vm1047, %v1039, %v835
        %v1057 = vsel %vm1047, %v1040, %v837
        %v1058 = vsel %vm1047, %v1041, %v839
        %v1059 = vsel %vm1047, %v1042, %v841
        %v1060 = vsel %vm1047, %v1043, %v843
        %v1061 = vsel %vm1047, %v1044, %v845
        %v1062 = vsel %vm1047, %v1045, %v847
        %v1063 = vsel %vm1047, %v1046, %v849
        %vm1064 = vcmask 228352
        %v1065 = vsel %vm1064, %v1048, %v867
        %v1066 = vsel %vm1064, %v1049, %v869
        %v1067 = vsel %vm1064, %v1050, %v871
        %v1068 = vsel %vm1064, %v1051, %v873
        %v1069 = vsel %vm1064, %v1052, %v875
        %v1070 = vsel %vm1064, %v1053, %v877
        %v1071 = vsel %vm1064, %v1054, %v879
        %v1072 = vsel %vm1064, %v1055, %v881
        %v1073 = vsel %vm1064, %v1056, %v883
        %v1074 = vsel %vm1064, %v1057, %v885
        %v1075 = vsel %vm1064, %v1058, %v887
        %v1076 = vsel %vm1064, %v1059, %v889
        %v1077 = vsel %vm1064, %v1060, %v891
        %v1078 = vsel %vm1064, %v1061, %v893
        %v1079 = vsel %vm1064, %v1062, %v895
        %v1080 = vsel %vm1064, %v1063, %v897
        %vm1081 = vcmask 261120
        %v1082 = vsel %vm1081, %v1065, %v915
        %v1083 = vsel %vm1081, %v1066, %v917
        %v1084 = vsel %vm1081, %v1067, %v919
        %v1085 = vsel %vm1081, %v1068, %v921
        %v1086 = vsel %vm1081, %v1069, %v923
        %v1087 = vsel %vm1081, %v1070, %v925
        %v1088 = vsel %vm1081, %v1071, %v927
        %v1089 = vsel %vm1081, %v1072, %v929
        %v1090 = vsel %vm1081, %v1073, %v931
        %v1091 = vsel %vm1081, %v1074, %v933
        %v1092 = vsel %vm1081, %v1075, %v935
        %v1093 = vsel %vm1081, %v1076, %v937
        %v1094 = vsel %vm1081, %v1077, %v939
        %v1095 = vsel %vm1081, %v1078, %v941
        %v1096 = vsel %vm1081, %v1079, %v943
        %v1097 = vsel %vm1081, %v1080, %v945
        %v1098 = vld [vmem:[%s1] sm:$0xff]
        %v1099 = vld [vmem:[%s1 + $0x8] sm:$0xff]
        %v1100 = vld [vmem:[%s1 + $0x10] sm:$0xff]
        %v1101 = vld [vmem:[%s1 + $0x18] sm:$0xff]
        %v1102 = vld [vmem:[%s1 + $0x20] sm:$0xf]
        %v1103 = vld [vmem:[%s2] sm:$0x1]
        %v1105 = vperm.slane %v1103, 0
        %vm1107 = vcmask 293888
        %v1109 = vsel %vm1107, %v1082, 0
        %v1112 = vsel %vm1107, %v1083, 0
        %v1115 = vsel %vm1107, %v1084, 0
        %v1118 = vsel %vm1107, %v1085, 0
        %v1121 = vsel %vm1107, %v1086, 0
        %v1124 = vsel %vm1107, %v1087, 0
        %v1127 = vsel %vm1107, %v1088, 0
        %v1130 = vsel %vm1107, %v1089, 0
        %v1133 = vsel %vm1107, %v1090, 0
        %v1136 = vsel %vm1107, %v1091, 0
        %v1139 = vsel %vm1107, %v1092, 0
        %v1142 = vsel %vm1107, %v1093, 0
        %v1145 = vsel %vm1107, %v1094, 0
        %v1148 = vsel %vm1107, %v1095, 0
        %v1151 = vsel %vm1107, %v1096, 0
        %v1154 = vsel %vm1107, %v1097, 0
        %vm1156 = vcmask 1043456
        %v1158 = vsel %vm1156, %v1102, 0
        %1160 = vmatpush.msra.mxu0 0.0
        %1161 = vmatpush.msra.mxu0 0.0
        %1162 = vmatpush.msra.mxu0 0.0
        %1163 = vmatpush.msra.mxu0 0.0
        %1164 = vmatpush.msra.mxu0 0.0
        %1165 = vmatpush.msra.mxu0 0.0
        %1166 = vmatpush.msra.mxu0 0.0
        %1167 = vmatpush.msra.mxu0 0.0
        %1168 = vmatpush.msra.mxu0 0.0
        %1169 = vmatpush.msra.mxu0 0.0
        %1170 = vmatpush.msra.mxu0 0.0
        %1171 = vmatpush.msra.mxu0 %v1158
        %1172 = vmatpush.msra.mxu0 %v1101
        %1173 = vmatpush.msra.mxu0 %v1100
        %1174 = vmatpush.msra.mxu0 %v1099
        %1175 = vmatpush.msra.mxu0 %v1098
        %1176 = vmatmul.f32.gmra.mxu0 %v1109
        %v1177 = vpop.f32.mrf.mxu0
        %v1178 = vadd.f32 %v1105, %v1177
        %1179 = vmatmul.f32.gmra.mxu0 %v1112
        %v1180 = vpop.f32.mrf.mxu0
        %v1181 = vadd.f32 %v1105, %v1180
        %1182 = vmatmul.f32.gmra.mxu0 %v1115
        %v1183 = vpop.f32.mrf.mxu0
        %v1184 = vadd.f32 %v1105, %v1183
        %1185 = vmatmul.f32.gmra.mxu0 %v1118
        %v1186 = vpop.f32.mrf.mxu0
        %v1187 = vadd.f32 %v1105, %v1186
        %1188 = vmatmul.f32.gmra.mxu0 %v1121
        %v1189 = vpop.f32.mrf.mxu0
        %v1190 = vadd.f32 %v1105, %v1189
        %1191 = vmatmul.f32.gmra.mxu0 %v1124
        %v1192 = vpop.f32.mrf.mxu0
        %v1193 = vadd.f32 %v1105, %v1192
        %1194 = vmatmul.f32.gmra.mxu0 %v1127
        %v1195 = vpop.f32.mrf.mxu0
        %v1196 = vadd.f32 %v1105, %v1195
        %1197 = vmatmul.f32.gmra.mxu0 %v1130
        %v1198 = vpop.f32.mrf.mxu0
        %v1199 = vadd.f32 %v1105, %v1198
        %1200 = vmatmul.f32.gmra.mxu0 %v1133
        %v1201 = vpop.f32.mrf.mxu0
        %v1202 = vadd.f32 %v1105, %v1201
        %1203 = vmatmul.f32.gmra.mxu0 %v1136
        %v1204 = vpop.f32.mrf.mxu0
        %v1205 = vadd.f32 %v1105, %v1204
        %1206 = vmatmul.f32.gmra.mxu0 %v1139
        %v1207 = vpop.f32.mrf.mxu0
        %v1208 = vadd.f32 %v1105, %v1207
        %1209 = vmatmul.f32.gmra.mxu0 %v1142
        %v1210 = vpop.f32.mrf.mxu0
        %v1211 = vadd.f32 %v1105, %v1210
        %1212 = vmatmul.f32.gmra.mxu0 %v1145
        %v1213 = vpop.f32.mrf.mxu0
        %v1214 = vadd.f32 %v1105, %v1213
        %1215 = vmatmul.f32.gmra.mxu0 %v1148
        %v1216 = vpop.f32.mrf.mxu0
        %v1217 = vadd.f32 %v1105, %v1216
        %1218 = vmatmul.f32.gmra.mxu0 %v1151
        %v1219 = vpop.f32.mrf.mxu0
        %v1220 = vadd.f32 %v1105, %v1219
        %1221 = vmatmul.f32.gmra.mxu0 %v1154
        %v1222 = vpop.f32.mrf.mxu0
        %v1223 = vadd.f32 %v1105, %v1222
        %1224 = vdwg.mxu0
        %1241 = vrot.lane.b32.xlu0 %v1178, 4
        %v1242 = vpop.permute.xlu0 %1241
        %1243 = vrot.lane.b32.xlu0 %v1181, 4
        %v1244 = vpop.permute.xlu0 %1243
        %1245 = vrot.lane.b32.xlu0 %v1184, 4
        %v1246 = vpop.permute.xlu0 %1245
        %1247 = vrot.lane.b32.xlu0 %v1187, 4
        %v1248 = vpop.permute.xlu0 %1247
        %1249 = vrot.lane.b32.xlu0 %v1190, 4
        %v1250 = vpop.permute.xlu0 %1249
        %1251 = vrot.lane.b32.xlu0 %v1193, 4
        %v1252 = vpop.permute.xlu0 %1251
        %1253 = vrot.lane.b32.xlu0 %v1196, 4
        %v1254 = vpop.permute.xlu0 %1253
        %1255 = vrot.lane.b32.xlu0 %v1199, 4
        %v1256 = vpop.permute.xlu0 %1255
        %1257 = vrot.lane.b32.xlu0 %v1202, 4
        %v1258 = vpop.permute.xlu0 %1257
        %1259 = vrot.lane.b32.xlu0 %v1205, 4
        %v1260 = vpop.permute.xlu0 %1259
        %1261 = vrot.lane.b32.xlu0 %v1208, 4
        %v1262 = vpop.permute.xlu0 %1261
        %1263 = vrot.lane.b32.xlu0 %v1211, 4
        %v1264 = vpop.permute.xlu0 %1263
        %1265 = vrot.lane.b32.xlu0 %v1214, 4
        %v1266 = vpop.permute.xlu0 %1265
        %1267 = vrot.lane.b32.xlu0 %v1217, 4
        %v1268 = vpop.permute.xlu0 %1267
        %1269 = vrot.lane.b32.xlu0 %v1220, 4
        %v1270 = vpop.permute.xlu0 %1269
        %1271 = vrot.lane.b32.xlu0 %v1223, 4
        %v1272 = vpop.permute.xlu0 %1271
        %v1289 = vsel %vm962, %v1178, %v1242
        %v1290 = vsel %vm962, %v1181, %v1244
        %v1291 = vsel %vm962, %v1184, %v1246
        %v1292 = vsel %vm962, %v1187, %v1248
        %v1293 = vsel %vm962, %v1190, %v1250
        %v1294 = vsel %vm962, %v1193, %v1252
        %v1295 = vsel %vm962, %v1196, %v1254
        %v1296 = vsel %vm962, %v1199, %v1256
        %v1297 = vsel %vm962, %v1202, %v1258
        %v1298 = vsel %vm962, %v1205, %v1260
        %v1299 = vsel %vm962, %v1208, %v1262
        %v1300 = vsel %vm962, %v1211, %v1264
        %v1301 = vsel %vm962, %v1214, %v1266
        %v1302 = vsel %vm962, %v1217, %v1268
        %v1303 = vsel %vm962, %v1220, %v1270
        %v1304 = vsel %vm962, %v1223, %v1272
        %v1305 = vrot.slane %v1293, 4
        %vm1306 = vcmask 1047556
        %v1307 = vsel %vm1306, %v1305, %v1289
        %v1308 = vrot.slane %v1289, 4
        %v1309 = vsel %vm1306, %v1293, %v1308
        %v1311 = vunpack.c.l.s4 1983009808
        %v1312 = vunpack.c.0.s8 %v1311
        %v1313 = vperm.slane %v1307, %v1312
        %v1315 = vunpack.c.l.s4 1983009808
        %v1316 = vunpack.c.0.s8 %v1315
        %v1317 = vperm.slane %v1309, %v1316
        %v1318 = vrot.slane %v1295, 4
        %v1319 = vsel %vm1306, %v1318, %v1291
        %v1320 = vrot.slane %v1291, 4
        %v1321 = vsel %vm1306, %v1295, %v1320
        %v1323 = vunpack.c.l.s4 1983009808
        %v1324 = vunpack.c.0.s8 %v1323
        %v1325 = vperm.slane %v1319, %v1324
        %v1327 = vunpack.c.l.s4 1983009808
        %v1328 = vunpack.c.0.s8 %v1327
        %v1329 = vperm.slane %v1321, %v1328
        %v1330 = vrot.slane %v1301, 4
        %v1331 = vsel %vm1306, %v1330, %v1297
        %v1332 = vrot.slane %v1297, 4
        %v1333 = vsel %vm1306, %v1301, %v1332
        %v1335 = vunpack.c.l.s4 1983009808
        %v1336 = vunpack.c.0.s8 %v1335
        %v1337 = vperm.slane %v1331, %v1336
        %v1339 = vunpack.c.l.s4 1983009808
        %v1340 = vunpack.c.0.s8 %v1339
        %v1341 = vperm.slane %v1333, %v1340
        %v1342 = vrot.slane %v1303, 4
        %v1343 = vsel %vm1306, %v1342, %v1299
        %v1344 = vrot.slane %v1299, 4
        %v1345 = vsel %vm1306, %v1303, %v1344
        %v1347 = vunpack.c.l.s4 1983009808
        %v1348 = vunpack.c.0.s8 %v1347
        %v1349 = vperm.slane %v1343, %v1348
        %v1351 = vunpack.c.l.s4 1983009808
        %v1352 = vunpack.c.0.s8 %v1351
        %v1353 = vperm.slane %v1345, %v1352
        %v1354 = vrot.slane %v1325, 4
        %v1355 = vsel %vm1306, %v1354, %v1313
        %v1356 = vrot.slane %v1313, 4
        %v1357 = vsel %vm1306, %v1325, %v1356
        %v1359 = vunpack.c.l.s4 1934713408
        %v1360 = vunpack.c.0.s8 %v1359
        %v1361 = vperm.slane %v1355, %v1360
        %v1363 = vunpack.c.l.s4 1934713408
        %v1364 = vunpack.c.0.s8 %v1363
        %v1365 = vperm.slane %v1357, %v1364
        %v1366 = vrot.slane %v1329, 4
        %v1367 = vsel %vm1306, %v1366, %v1317
        %v1368 = vrot.slane %v1317, 4
        %v1369 = vsel %vm1306, %v1329, %v1368
        %v1371 = vunpack.c.l.s4 1934713408
        %v1372 = vunpack.c.0.s8 %v1371
        %v1373 = vperm.slane %v1367, %v1372
        %v1375 = vunpack.c.l.s4 1934713408
        %v1376 = vunpack.c.0.s8 %v1375
        %v1377 = vperm.slane %v1369, %v1376
        %v1378 = vrot.slane %v1349, 4
        %v1379 = vsel %vm1306, %v1378, %v1337
        %v1380 = vrot.slane %v1337, 4
        %v1381 = vsel %vm1306, %v1349, %v1380
        %v1383 = vunpack.c.l.s4 1934713408
        %v1384 = vunpack.c.0.s8 %v1383
        %v1385 = vperm.slane %v1379, %v1384
        %v1387 = vunpack.c.l.s4 1934713408
        %v1388 = vunpack.c.0.s8 %v1387
        %v1389 = vperm.slane %v1381, %v1388
        %v1390 = vrot.slane %v1353, 4
        %v1391 = vsel %vm1306, %v1390, %v1341
        %v1392 = vrot.slane %v1341, 4
        %v1393 = vsel %vm1306, %v1353, %v1392
        %v1395 = vunpack.c.l.s4 1934713408
        %v1396 = vunpack.c.0.s8 %v1395
        %v1397 = vperm.slane %v1391, %v1396
        %v1399 = vunpack.c.l.s4 1934713408
        %v1400 = vunpack.c.0.s8 %v1399
        %v1401 = vperm.slane %v1393, %v1400
        %v1402 = vrot.slane %v1385, 4
        %v1403 = vsel %vm1306, %v1402, %v1361
        %v1404 = vrot.slane %v1361, 4
        %v1405 = vsel %vm1306, %v1385, %v1404
        %v1406 = vrot.slane %v1389, 4
        %v1407 = vsel %vm1306, %v1406, %v1365
        %v1408 = vrot.slane %v1365, 4
        %v1409 = vsel %vm1306, %v1389, %v1408
        %v1410 = vrot.slane %v1397, 4
        %v1411 = vsel %vm1306, %v1410, %v1373
        %v1412 = vrot.slane %v1373, 4
        %v1413 = vsel %vm1306, %v1397, %v1412
        %v1414 = vrot.slane %v1401, 4
        %v1415 = vsel %vm1306, %v1414, %v1377
        %v1416 = vrot.slane %v1377, 4
        %v1417 = vsel %vm1306, %v1401, %v1416
        %v1418 = vrot.slane %v1294, 4
        %v1419 = vsel %vm1306, %v1418, %v1290
        %v1420 = vrot.slane %v1290, 4
        %v1421 = vsel %vm1306, %v1294, %v1420
        %v1423 = vunpack.c.l.s4 1983009808
        %v1424 = vunpack.c.0.s8 %v1423
        %v1425 = vperm.slane %v1419, %v1424
        %v1427 = vunpack.c.l.s4 1983009808
        %v1428 = vunpack.c.0.s8 %v1427
        %v1429 = vperm.slane %v1421, %v1428
        %v1430 = vrot.slane %v1296, 4
        %v1431 = vsel %vm1306, %v1430, %v1292
        %v1432 = vrot.slane %v1292, 4
        %v1433 = vsel %vm1306, %v1296, %v1432
        %v1435 = vunpack.c.l.s4 1983009808
        %v1436 = vunpack.c.0.s8 %v1435
        %v1437 = vperm.slane %v1431, %v1436
        %v1439 = vunpack.c.l.s4 1983009808
        %v1440 = vunpack.c.0.s8 %v1439
        %v1441 = vperm.slane %v1433, %v1440
        %v1442 = vrot.slane %v1302, 4
        %v1443 = vsel %vm1306, %v1442, %v1298
        %v1444 = vrot.slane %v1298, 4
        %v1445 = vsel %vm1306, %v1302, %v1444
        %v1447 = vunpack.c.l.s4 1983009808
        %v1448 = vunpack.c.0.s8 %v1447
        %v1449 = vperm.slane %v1443, %v1448
        %v1451 = vunpack.c.l.s4 1983009808
        %v1452 = vunpack.c.0.s8 %v1451
        %v1453 = vperm.slane %v1445, %v1452
        %v1454 = vrot.slane %v1304, 4
        %v1455 = vsel %vm1306, %v1454, %v1300
        %v1456 = vrot.slane %v1300, 4
        %v1457 = vsel %vm1306, %v1304, %v1456
        %v1459 = vunpack.c.l.s4 1983009808
        %v1460 = vunpack.c.0.s8 %v1459
        %v1461 = vperm.slane %v1455, %v1460
        %v1463 = vunpack.c.l.s4 1983009808
        %v1464 = vunpack.c.0.s8 %v1463
        %v1465 = vperm.slane %v1457, %v1464
        %v1466 = vrot.slane %v1437, 4
        %v1467 = vsel %vm1306, %v1466, %v1425
        %v1468 = vrot.slane %v1425, 4
        %v1469 = vsel %vm1306, %v1437, %v1468
        %v1471 = vunpack.c.l.s4 1934713408
        %v1472 = vunpack.c.0.s8 %v1471
        %v1473 = vperm.slane %v1467, %v1472
        %v1475 = vunpack.c.l.s4 1934713408
        %v1476 = vunpack.c.0.s8 %v1475
        %v1477 = vperm.slane %v1469, %v1476
        %v1478 = vrot.slane %v1441, 4
        %v1479 = vsel %vm1306, %v1478, %v1429
        %v1480 = vrot.slane %v1429, 4
        %v1481 = vsel %vm1306, %v1441, %v1480
        %v1483 = vunpack.c.l.s4 1934713408
        %v1484 = vunpack.c.0.s8 %v1483
        %v1485 = vperm.slane %v1479, %v1484
        %v1487 = vunpack.c.l.s4 1934713408
        %v1488 = vunpack.c.0.s8 %v1487
        %v1489 = vperm.slane %v1481, %v1488
        %v1490 = vrot.slane %v1461, 4
        %v1491 = vsel %vm1306, %v1490, %v1449
        %v1492 = vrot.slane %v1449, 4
        %v1493 = vsel %vm1306, %v1461, %v1492
        %v1495 = vunpack.c.l.s4 1934713408
        %v1496 = vunpack.c.0.s8 %v1495
        %v1497 = vperm.slane %v1491, %v1496
        %v1499 = vunpack.c.l.s4 1934713408
        %v1500 = vunpack.c.0.s8 %v1499
        %v1501 = vperm.slane %v1493, %v1500
        %v1502 = vrot.slane %v1465, 4
        %v1503 = vsel %vm1306, %v1502, %v1453
        %v1504 = vrot.slane %v1453, 4
        %v1505 = vsel %vm1306, %v1465, %v1504
        %v1507 = vunpack.c.l.s4 1934713408
        %v1508 = vunpack.c.0.s8 %v1507
        %v1509 = vperm.slane %v1503, %v1508
        %v1511 = vunpack.c.l.s4 1934713408
        %v1512 = vunpack.c.0.s8 %v1511
        %v1513 = vperm.slane %v1505, %v1512
        %v1514 = vrot.slane %v1497, 4
        %v1515 = vsel %vm1306, %v1514, %v1473
        %v1516 = vrot.slane %v1473, 4
        %v1517 = vsel %vm1306, %v1497, %v1516
        %v1518 = vrot.slane %v1501, 4
        %v1519 = vsel %vm1306, %v1518, %v1477
        %v1520 = vrot.slane %v1477, 4
        %v1521 = vsel %vm1306, %v1501, %v1520
        %v1522 = vrot.slane %v1509, 4
        %v1523 = vsel %vm1306, %v1522, %v1485
        %v1524 = vrot.slane %v1485, 4
        %v1525 = vsel %vm1306, %v1509, %v1524
        %v1526 = vrot.slane %v1513, 4
        %v1527 = vsel %vm1306, %v1526, %v1489
        %v1528 = vrot.slane %v1489, 4
        %v1529 = vsel %vm1306, %v1513, %v1528
        %1531 = vrot.lane.b32.xlu0 %v1405, 8
        %v1532 = vpop.permute.xlu0 %1531
        %1535 = vrot.lane.b32.xlu0 %v1407, 16
        %v1536 = vpop.permute.xlu0 %1535
        %1539 = vrot.lane.b32.xlu0 %v1409, 24
        %v1540 = vpop.permute.xlu0 %1539
        %1543 = vrot.lane.b32.xlu0 %v1411, 32
        %v1544 = vpop.permute.xlu0 %1543
        %1547 = vrot.lane.b32.xlu0 %v1413, 40
        %v1548 = vpop.permute.xlu0 %1547
        %1551 = vrot.lane.b32.xlu0 %v1415, 48
        %v1552 = vpop.permute.xlu0 %1551
        %1555 = vrot.lane.b32.xlu0 %v1417, 56
        %v1556 = vpop.permute.xlu0 %1555
        %1559 = vrot.lane.b32.xlu0 %v1515, 64
        %v1560 = vpop.permute.xlu0 %1559
        %1563 = vrot.lane.b32.xlu0 %v1517, 72
        %v1564 = vpop.permute.xlu0 %1563
        %1567 = vrot.lane.b32.xlu0 %v1519, 80
        %v1568 = vpop.permute.xlu0 %1567
        %1571 = vrot.lane.b32.xlu0 %v1521, 88
        %v1572 = vpop.permute.xlu0 %1571
        %1575 = vrot.lane.b32.xlu0 %v1523, 96
        %v1576 = vpop.permute.xlu0 %1575
        %1579 = vrot.lane.b32.xlu0 %v1525, 104
        %v1580 = vpop.permute.xlu0 %1579
        %1583 = vrot.lane.b32.xlu0 %v1527, 112
        %v1584 = vpop.permute.xlu0 %1583
        %1587 = vrot.lane.b32.xlu0 %v1529, 120
        %v1588 = vpop.permute.xlu0 %1587
        %v1590 = vsel %vm979, %v1403, %v1532
        %v1591 = vsel %vm1013, %v1590, %v1536
        %v1592 = vsel %vm1047, %v1591, %v1540
        %v1593 = vsel %vm1081, %v1592, %v1544
        %vm1594 = vcmask 326656
        %v1595 = vsel %vm1594, %v1593, %v1548
        %vm1596 = vcmask 392192
        %v1597 = vsel %vm1596, %v1595, %v1552
        %vm1598 = vcmask 457728
        %v1599 = vsel %vm1598, %v1597, %v1556
        %vm1600 = vcmask 523264
        %v1601 = vsel %vm1600, %v1599, %v1560
        %vm1602 = vcmask 588800
        %v1603 = vsel %vm1602, %v1601, %v1564
        %vm1604 = vcmask 654336
        %v1605 = vsel %vm1604, %v1603, %v1568
        %vm1606 = vcmask 719872
        %v1607 = vsel %vm1606, %v1605, %v1572
        %vm1608 = vcmask 785408
        %v1609 = vsel %vm1608, %v1607, %v1576
        %vm1610 = vcmask 850944
        %v1611 = vsel %vm1610, %v1609, %v1580
        %vm1612 = vcmask 916480
        %v1613 = vsel %vm1612, %v1611, %v1584
        %vm1614 = vcmask 982016
        %v1615 = vsel %vm1614, %v1613, %v1588
        %1616 = vst [vmem:[%s177] sm:$0xff] %v1615
        %1617 = vst [vmem:[%s177 + $0x8] sm:$0xff] %v1615
        %s1618 = sand.u32 %s107, 1
        %s1619 = scalar_lea.sflag [#allocation3], %s1618
        %s1620 = sand.u32 %s107, 1
        %s1621 = smul.addr %s1620, 16
        %s1622 = scalar_lea.vmem [#allocation2], %s1621
        // Predicated region
        $region33: #{tpu_custom_call.1} parent=31 // pred_check
          %p1623 = pneg %p117
        $region34: #{tpu_custom_call.1} parent=31 // pred_check_branch
          %1625 = sbr.rel (%p1623) target = $region36
        $region35: #{tpu_custom_call.1} parent=31 // pred_region
          %1627 = vsyncadd %s1619, 0
          %s1628 = smul.addr %s22, 2
          %s1629 = smul.addr %s21, 4
          %s1630 = sadd.s32 %s1628, %s1629
          %s1631 = smul.addr %s1630, 8
          %s1632 = scalar_lea.hbm %s3, %s1631
          %s1634 = sshll.u32 %s1622, 4
          %s1635 = int_to_ptr.vmem [resolvable:$true] %s1634
          %s1636 = sshll.u32 %s1632, 4
          %s1637 = int_to_ptr.hbm [resolvable:$true] %s1636
          %1639 = dma.vmem_to_hbm [thread:$0]  %s1635, 256, %s1637, %s1619
        $region36: #{tpu_custom_call.1} parent=31 // pred_fallthru
          _
      $region32: #{tpu_custom_call.1} parent=5 // pred_fallthru
        _
      %p1640 = scmp.le.s32.totalorder 2, %s12
      // Predicated region
      $region37: #{tpu_custom_call.1} parent=5 // pred_check
        %p1641 = pneg %p1640
      $region38: #{tpu_custom_call.1} parent=5 // pred_check_branch
        %1643 = sbr.rel (%p1641) target = $region40
      $region39: #{tpu_custom_call.1} parent=5 // pred_region
        %s1644 = ssub.s32 %s12, 2
        // Predicated region
        $region41: #{tpu_custom_call.1} parent=39 // pred_check
          %p1645 = pneg %p123
        $region42: #{tpu_custom_call.1} parent=39 // pred_check_branch
          %1647 = sbr.rel (%p1645) target = $region44
        $region43: #{tpu_custom_call.1} parent=39 // pred_region
          %s1648 = sand.u32 %s108, 1
          %s1649 = scalar_lea.sflag [#allocation3], %s1648
          %s1650 = sand.u32 %s108, 1
          %s1651 = smul.addr %s1650, 16
          %s1652 = scalar_lea.vmem [#allocation2], %s1651
          %1654 = dma.done %s1649, 256
        $region44: #{tpu_custom_call.1} parent=39 // pred_fallthru
          _
      $region40: #{tpu_custom_call.1} parent=5 // pred_fallthru
        _
    $region6: #{tpu_custom_call.1} parent=1 // loop_footer
      %s16 = sadd.s32 1, %s12
    $region7: #{tpu_custom_call.1} parent=1 // loop_footer_branch
      %11 = sbr.rel target = $region3
    $region8: #{tpu_custom_call.1} parent=1 // loop_exit
      _
    %1655 = vsyncpa [#allocation3], 1
    %s1656 = scalar_lea.sflag [#allocation3], 1
    %1657 = vsyncpa %s1656, 1

</llo_original>
